<compile_context>
chip_gen: v7x
topology: tpu7x:2x2x1
jax: 0.10.0
libtpu: 0.0.40
codegen_flags: <defaults>
</compile_context>

<pallas_src>
import functools
import math

import jax
import jax.numpy as jnp
from jax.experimental import pallas as pl
from jax.experimental.pallas import tpu as pltpu


# ---------------------------------------------------------------------------
# Hardware-aware configuration
# ---------------------------------------------------------------------------
def _tpu_vmem_bytes() -> int:
    try:
        return int(pltpu.get_tpu_info().vmem_capacity_bytes)
    except Exception:
        return 128 * 1024 * 1024  # conservative default (v5e/v6e)


def _vmem_limit_bytes() -> int:
    cap = _tpu_vmem_bytes()
    # v7x: 64 MiB physical -> ~48 MiB limit; v5e/v6e: 128 MiB -> ~96 MiB.
    return int(min((cap * 3) // 4, 100 * 1024 * 1024))


def _tile_targets():
    cap = _tpu_vmem_bytes()
    if cap >= 96 * 1024 * 1024:   # v5e / v6e (128 MiB VMEM): big tiles amortize DMA
        return 1024, 512
    return 512, 256               # v7x (64 MiB VMEM): halve the tiles


def _pick_tile(dim: int, target: int) -> int:
    """Largest power-of-two-ish divisor of `dim` that is <= target (else `dim`)."""
    if dim <= target:
        return dim
    t = target
    while t > 1:
        if dim % t == 0:
            return t
        t //= 2
    return dim


# ---------------------------------------------------------------------------
# Kernel 1: KV projection (de-interleaved head-contiguous K / V outputs)
# ---------------------------------------------------------------------------
def _kv_proj_kernel(x_ref, wk_ref, bk_ref, wv_ref, bv_ref, k_ref, v_ref):
    x = x_ref[...]                                                    # (TS, D)
    k_ref[...] = (jnp.dot(x, wk_ref[...], preferred_element_type=jnp.float32)
                  + bk_ref[...]).astype(k_ref.dtype)
    v_ref[...] = (jnp.dot(x, wv_ref[...], preferred_element_type=jnp.float32)
                  + bv_ref[...]).astype(v_ref.dtype)


# ---------------------------------------------------------------------------
# Kernel 2: flash-style cross attention + fused q / output projections
# ---------------------------------------------------------------------------
def _flash_mhca_kernel(*refs, num_heads, head_dim, has_mask):
    if has_mask:
        (y_ref, k_ref, v_ref, mask_ref, wq_ref, bq_ref, wo_ref, bo_ref,
         o_ref, q_scr, m_scr, l_scr, acc_scr) = refs
    else:
        (y_ref, k_ref, v_ref, wq_ref, bq_ref, wo_ref, bo_ref,
         o_ref, q_scr, m_scr, l_scr, acc_scr) = refs
        mask_ref = None

    ki = pl.program_id(2)

    @pl.when(ki == 0)
    def _init():
        # q projection, with 1/sqrt(head_dim) folded into q once per query tile.
        scale = 1.0 / math.sqrt(head_dim)
        q = (jnp.dot(y_ref[...], wq_ref[...], preferred_element_type=jnp.float32)
             + bq_ref[...]) * scale
        q_scr[...] = q.astype(q_scr.dtype)
        m_scr[...] = jnp.full(m_scr.shape, -jnp.inf, dtype=m_scr.dtype)
        l_scr[...] = jnp.zeros(l_scr.shape, dtype=l_scr.dtype)
        acc_scr[...] = jnp.zeros(acc_scr.shape, dtype=acc_scr.dtype)

    q = q_scr[...]                                                    # (TQ, D)
    k = k_ref[...]                                                    # (TK, D)
    v = v_ref[...]                                                    # (TK, D)
    mask = mask_ref[...].astype(jnp.float32) if has_mask else None    # (TQ, TK)

    # Static (trace-time unrolled) loop over heads; per-head slices are contiguous
    # because K/V were de-interleaved wrapper-side.
    for h in range(num_heads):
        sl = slice(h * head_dim, (h + 1) * head_dim)
        s = jax.lax.dot_general(q[:, sl], k[:, sl], (((1,), (1,)), ((), ())),
                                preferred_element_type=jnp.float32)   # (TQ, TK)
        if mask is not None:
            s = s + mask
        m_prev = m_scr[h]                                             # (TQ, 1)
        m_new = jnp.maximum(m_prev, jnp.max(s, axis=-1, keepdims=True))
        alpha = jnp.exp(m_prev - m_new)                               # (TQ, 1)
        p = jnp.exp(s - m_new)                                        # (TQ, TK)
        l_scr[h] = alpha * l_scr[h] + jnp.sum(p, axis=-1, keepdims=True)
        m_scr[h] = m_new
        pv = jnp.dot(p.astype(v.dtype), v[:, sl],
                     preferred_element_type=jnp.float32)              # (TQ, hd)
        acc_scr[:, sl] = alpha * acc_scr[:, sl] + pv

    @pl.when(ki == pl.num_programs(2) - 1)
    def _finalize():
        # Normalize after the PV matmul (EUP reciprocal + (TQ,hd) multiplies instead
        # of dividing the (TQ,TK) score matrix), then one wide output projection.
        for h in range(num_heads):
            sl = slice(h * head_dim, (h + 1) * head_dim)
            inv_l = pl.reciprocal(l_scr[h], approx=True)              # (TQ, 1)
            acc_scr[:, sl] = acc_scr[:, sl] * inv_l
        vals = acc_scr[...].astype(wo_ref.dtype)                      # (TQ, D)
        out = (jnp.dot(vals, wo_ref[...], preferred_element_type=jnp.float32)
               + bo_ref[...])
        o_ref[...] = out.astype(o_ref.dtype)


# ---------------------------------------------------------------------------
# Wrapper
# ---------------------------------------------------------------------------
def multi_head_cross_attention(x, y, wkv, bkv, wq, bq, wo, bo, *,
                               num_heads, mask=None):
    """x, y: (B, S, D). Weights pre-transposed for right-multiplication:
    wkv: (D, 2D) (nn.Linear column order -> per-head [k_h|v_h]), wq/wo: (D, D)."""
    B, S, D = x.shape
    assert y.shape == (B, S, D)
    assert D % num_heads == 0
    head_dim = D // num_heads
    has_mask = mask is not None

    # De-interleave the KV projection wrapper-side (free in-kernel):
    # nn.Linear(d, 2d) + reshape(B,S,H,2*hd) means columns are [k_0|v_0|k_1|v_1|...].
    wkv_r = wkv.reshape(D, num_heads, 2, head_dim)
    wk = wkv_r[:, :, 0, :].reshape(D, D)
    wv = wkv_r[:, :, 1, :].reshape(D, D)
    bkv_r = bkv.reshape(num_heads, 2, head_dim)
    bk = bkv_r[:, 0, :].reshape(1, D)
    bv = bkv_r[:, 1, :].reshape(1, D)
    bq2 = bq.reshape(1, D)
    bo2 = bo.reshape(1, D)

    tq_target, tk_target = _tile_targets()
    TS = _pick_tile(S, max(tq_target, tk_target))
    TQ = _pick_tile(S, tq_target)
    TK = _pick_tile(S, tk_target)
    n_q, n_k = S // TQ, S // TK

    itemsize = jnp.dtype(x.dtype).itemsize
    vmem_limit = _vmem_limit_bytes()

    # ------------------------- KV projection call -------------------------
    k_arr, v_arr = pl.pallas_call(
        _kv_proj_kernel,
        out_shape=(jax.ShapeDtypeStruct((B, S, D), x.dtype),
                   jax.ShapeDtypeStruct((B, S, D), x.dtype)),
        grid_spec=pltpu.PrefetchScalarGridSpec(
            num_scalar_prefetch=0,
            grid=(B, S // TS),
            in_specs=[
                pl.BlockSpec((None, TS, D), lambda b, s: (b, s, 0)),   # x tile
                pl.BlockSpec((D, D), lambda b, s: (0, 0)),             # Wk
                pl.BlockSpec((1, D), lambda b, s: (0, 0)),             # bk
                pl.BlockSpec((D, D), lambda b, s: (0, 0)),             # Wv
                pl.BlockSpec((1, D), lambda b, s: (0, 0)),             # bv
            ],
            out_specs=[
                pl.BlockSpec((None, TS, D), lambda b, s: (b, s, 0)),   # K
                pl.BlockSpec((None, TS, D), lambda b, s: (b, s, 0)),   # V
            ],
        ),
        compiler_params=pltpu.CompilerParams(
            dimension_semantics=("parallel", "parallel"),
            vmem_limit_bytes=vmem_limit,
        ),
        cost_estimate=pl.CostEstimate(
            flops=int(4 * B * S * D * D),
            transcendentals=0,
            bytes_accessed=int(itemsize * (3 * B * S * D + 2 * D * D + 2 * D)),
        ),
    )(x, wk, bk, wv, bv)

    # ------------------------- flash attention call -----------------------
    in_specs = [
        pl.BlockSpec((None, TQ, D), lambda b, qi, ki: (b, qi, 0)),     # y
        pl.BlockSpec((None, TK, D), lambda b, qi, ki: (b, ki, 0)),     # K
        pl.BlockSpec((None, TK, D), lambda b, qi, ki: (b, ki, 0)),     # V
    ]
    args = [y, k_arr, v_arr]

    mask4 = None
    if has_mask:
        if mask.ndim == 2:
            mask4 = mask.reshape(1, 1, S, S)
        elif mask.ndim == 3:
            mask4 = mask.reshape(mask.shape[0], 1, S, S)
        else:
            mask4 = mask
        assert mask4.shape in ((1, 1, S, S), (B, 1, S, S)), mask4.shape
        if mask4.shape[0] == 1:
            # batch-broadcast mask: constant batch index -> not re-streamed per batch
            mask_spec = pl.BlockSpec((None, None, TQ, TK),
                                     lambda b, qi, ki: (0, 0, qi, ki))
        else:
            mask_spec = pl.BlockSpec((None, None, TQ, TK),
                                     lambda b, qi, ki: (b, 0, qi, ki))
        in_specs.append(mask_spec)
        args.append(mask4)

    in_specs += [
        pl.BlockSpec((D, D), lambda b, qi, ki: (0, 0)),                # Wq
        pl.BlockSpec((1, D), lambda b, qi, ki: (0, 0)),                # bq
        pl.BlockSpec((D, D), lambda b, qi, ki: (0, 0)),                # Wo
        pl.BlockSpec((1, D), lambda b, qi, ki: (0, 0)),                # bo
    ]
    args += [wq, bq2, wo, bo2]

    scratch_shapes = [
        pltpu.VMEM((TQ, D), x.dtype),                     # pre-scaled q tile
        pltpu.VMEM((num_heads, TQ, 1), jnp.float32),      # running max  m
        pltpu.VMEM((num_heads, TQ, 1), jnp.float32),      # running sum  l
        pltpu.VMEM((TQ, D), jnp.float32),                 # output accumulator
    ]

    flops = (2 * B * S * D * D            # q projection
             + 4 * B * S * S * D          # q k^T and attn @ v (all heads)
             + 2 * B * S * D * D)         # output projection
    bytes_accessed = itemsize * (B * S * D                 # y
                                 + 2 * B * S * D * n_q     # K,V streamed per q tile
                                 + B * S * D               # out
                                 + 2 * D * D + 2 * D)      # weights + biases
    if has_mask:
        bytes_accessed += jnp.dtype(mask4.dtype).itemsize * B * S * S

    kernel = functools.partial(_flash_mhca_kernel, num_heads=num_heads,
                               head_dim=head_dim, has_mask=has_mask)

    return pl.pallas_call(
        kernel,
        out_shape=jax.ShapeDtypeStruct((B, S, D), x.dtype),
        grid_spec=pltpu.PrefetchScalarGridSpec(
            num_scalar_prefetch=0,
            grid=(B, n_q, n_k),
            in_specs=in_specs,
            out_specs=pl.BlockSpec((None, TQ, D), lambda b, qi, ki: (b, qi, 0)),
            scratch_shapes=scratch_shapes,
        ),
        compiler_params=pltpu.CompilerParams(
            dimension_semantics=("parallel", "parallel", "arbitrary"),
            vmem_limit_bytes=vmem_limit,
        ),
        cost_estimate=pl.CostEstimate(
            flops=int(flops),
            transcendentals=int(B * num_heads * S * S),
            bytes_accessed=int(bytes_accessed),
        ),
    )(*args)


# ---------------------------------------------------------------------------
# Plain-JAX reference matching the PyTorch module's math
# ---------------------------------------------------------------------------
def ref_mhca(x, y, wkv, bkv, wq, bq, wo, bo, *, num_heads, mask=None):
    B, S, D = x.shape
    hd = D // num_heads
    kv = x @ wkv + bkv
    q = y @ wq + bq
    kv = kv.reshape(B, S, num_heads, 2 * hd).transpose(0, 2, 1, 3)    # (B,H,S,2hd)
    q = q.reshape(B, S, num_heads, hd).transpose(0, 2, 1, 3)          # (B,H,S,hd)
    k, v = kv[..., :hd], kv[..., hd:]
    scores = jnp.einsum("bhqd,bhkd->bhqk", q, k) / math.sqrt(hd)
    if mask is not None:
        scores = scores + mask            # broadcast over heads (and batch if 2-D)
    attn = jax.nn.softmax(scores, axis=-1)
    vals = jnp.einsum("bhqk,bhkd->bhqd", attn, v)
    vals = vals.transpose(0, 2, 1, 3).reshape(B, S, D)
    return vals @ wo + bo


if __name__ == "__main__":
    batch, seq_len, d_model, num_heads = 2, 8, 32, 4

    key = jax.random.PRNGKey(0)
    kx, ky, k1, k2, k3, k4, k5, k6 = jax.random.split(key, 8)

    x = jax.random.normal(kx, (batch, seq_len, d_model), dtype=jnp.float32)
    y = jax.random.normal(ky, (batch, seq_len, d_model), dtype=jnp.float32)

    # nn.Linear weights (stored pre-transposed for right-multiplication).
    bound = 1.0 / math.sqrt(d_model)
    wkv = jax.random.uniform(k1, (d_model, 2 * d_model), minval=-bound, maxval=bound,
                             dtype=jnp.float32)
    bkv = jax.random.uniform(k2, (2 * d_model,), minval=-bound, maxval=bound,
                             dtype=jnp.float32)
    wq = jax.random.uniform(k3, (d_model, d_model), minval=-bound, maxval=bound,
                            dtype=jnp.float32)
    bq = jax.random.uniform(k4, (d_model,), minval=-bound, maxval=bound,
                            dtype=jnp.float32)
    wo = jax.random.uniform(k5, (d_model, d_model), minval=-bound, maxval=bound,
                            dtype=jnp.float32)
    bo = jax.random.uniform(k6, (d_model,), minval=-bound, maxval=bound,
                            dtype=jnp.float32)

    # Additive causal mask: 0 allowed, -1e9 disallowed.
    causal = jnp.where(jnp.tril(jnp.ones((seq_len, seq_len), dtype=bool)),
                       0.0, -1e9).astype(jnp.float32)
    mask_b = jnp.broadcast_to(causal, (batch, 1, seq_len, seq_len)).astype(jnp.float32)

    tol = dict(atol=2e-3, rtol=2e-3)   # approx (EUP) reciprocal in the finalize

    # --- no-mask path ---
    out0 = jax.block_until_ready(
        multi_head_cross_attention(x, y, wkv, bkv, wq, bq, wo, bo,
                                   num_heads=num_heads))
    ref0 = ref_mhca(x, y, wkv, bkv, wq, bq, wo, bo, num_heads=num_heads)
    assert out0.shape == (batch, seq_len, d_model)
    assert jnp.allclose(out0, ref0, **tol), float(jnp.max(jnp.abs(out0 - ref0)))

    # --- 2-D (S,S) mask: bit-matches the PyTorch permute semantics ---
    out1 = jax.block_until_ready(
        multi_head_cross_attention(x, y, wkv, bkv, wq, bq, wo, bo,
                                   num_heads=num_heads, mask=causal))
    ref1 = ref_mhca(x, y, wkv, bkv, wq, bq, wo, bo, num_heads=num_heads, mask=causal)
    assert jnp.allclose(out1, ref1, **tol), float(jnp.max(jnp.abs(out1 - ref1)))

    # --- (B,1,S,S) per-batch mask (conventional broadcast-over-heads semantics) ---
    out2 = jax.block_until_ready(
        multi_head_cross_attention(x, y, wkv, bkv, wq, bq, wo, bo,
                                   num_heads=num_heads, mask=mask_b))
    ref2 = ref_mhca(x, y, wkv, bkv, wq, bq, wo, bo, num_heads=num_heads, mask=mask_b)
    assert jnp.allclose(out2, ref2, **tol), float(jnp.max(jnp.abs(out2 - ref2)))

    print("KERNEL_OK")
</pallas_src>

<mosaic_0001>
module attributes {stable_mosaic.version = 11 : i64} {
  func.func @_kv_proj_kernel(%arg0: i32, %arg1: i32, %arg2: memref<1x8x32xf32, #tpu.memory_space<vmem>>, %arg3: memref<32x32xf32, #tpu.memory_space<vmem>>, %arg4: memref<1x32xf32, #tpu.memory_space<vmem>>, %arg5: memref<32x32xf32, #tpu.memory_space<vmem>>, %arg6: memref<1x32xf32, #tpu.memory_space<vmem>>, %arg7: memref<1x8x32xf32, #tpu.memory_space<vmem>>, %arg8: memref<1x8x32xf32, #tpu.memory_space<vmem>>) attributes {dimension_semantics = [#tpu.dimension_semantics<parallel>, #tpu.dimension_semantics<parallel>], iteration_bounds = array<i64: 2, 1>, scalar_prefetch = 0 : i64, scratch_operands = 0 : i64, tpu.core_type = #tpu.core_type<tc>, window_params = [{transform_indices = @transform_0, window_bounds = array<i64: 1, 8, 32>}, {pipeline_mode = #tpu.pipeline_mode<synchronous>, transform_indices = @transform_1, window_bounds = array<i64: 32, 32>}, {pipeline_mode = #tpu.pipeline_mode<synchronous>, transform_indices = @transform_2, window_bounds = array<i64: 1, 32>}, {pipeline_mode = #tpu.pipeline_mode<synchronous>, transform_indices = @transform_3, window_bounds = array<i64: 32, 32>}, {pipeline_mode = #tpu.pipeline_mode<synchronous>, transform_indices = @transform_4, window_bounds = array<i64: 1, 32>}, {transform_indices = @transform_5, window_bounds = array<i64: 1, 8, 32>}, {transform_indices = @transform_6, window_bounds = array<i64: 1, 8, 32>}]} {
    %c0 = arith.constant 0 : index
    %c0_0 = arith.constant 0 : index
    %c0_1 = arith.constant 0 : index
    %0 = vector.load %arg2[%c0, %c0_0, %c0_1] : memref<1x8x32xf32, #tpu.memory_space<vmem>>, vector<1x8x32xf32>
    %1 = vector.shape_cast %0 : vector<1x8x32xf32> to vector<8x32xf32>
    %c0_2 = arith.constant 0 : index
    %c0_3 = arith.constant 0 : index
    %2 = vector.load %arg3[%c0_2, %c0_3] : memref<32x32xf32, #tpu.memory_space<vmem>>, vector<32x32xf32>
    %cst = arith.constant dense<0.000000e+00> : vector<8x32xf32>
    %3 = tpu.matmul %1, %2, %cst {dimension_numbers = #tpu.dot_dimension_numbers<[1], [0], [0], [1], [0, 0, 1, 1], [], []>} : vector<8x32xf32>, vector<32x32xf32>, vector<8x32xf32> -> vector<8x32xf32>
    %c0_4 = arith.constant 0 : index
    %c0_5 = arith.constant 0 : index
    %4 = vector.load %arg4[%c0_4, %c0_5] : memref<1x32xf32, #tpu.memory_space<vmem>>, vector<1x32xf32>
    %5 = vector.broadcast %4 : vector<1x32xf32> to vector<8x32xf32>
    %6 = arith.addf %3, %5 : vector<8x32xf32>
    %c0_6 = arith.constant 0 : index
    %c0_7 = arith.constant 0 : index
    %c0_8 = arith.constant 0 : index
    %7 = vector.load %arg7[%c0_6, %c0_7, %c0_8] : memref<1x8x32xf32, #tpu.memory_space<vmem>>, vector<1x8x32xf32>
    %8 = vector.shape_cast %7 : vector<1x8x32xf32> to vector<8x32xf32>
    %9 = vector.shape_cast %6 : vector<8x32xf32> to vector<1x8x32xf32>
    tpu.vector_store %arg7[%c0_6, %c0_7, %c0_8], %9 {strides = array<i32>} : memref<1x8x32xf32, #tpu.memory_space<vmem>>, vector<1x8x32xf32>,
    %c0_9 = arith.constant 0 : index
    %c0_10 = arith.constant 0 : index
    %10 = vector.load %arg5[%c0_9, %c0_10] : memref<32x32xf32, #tpu.memory_space<vmem>>, vector<32x32xf32>
    %cst_11 = arith.constant dense<0.000000e+00> : vector<8x32xf32>
    %11 = tpu.matmul %1, %10, %cst_11 {dimension_numbers = #tpu.dot_dimension_numbers<[1], [0], [0], [1], [0, 0, 1, 1], [], []>} : vector<8x32xf32>, vector<32x32xf32>, vector<8x32xf32> -> vector<8x32xf32>
    %c0_12 = arith.constant 0 : index
    %c0_13 = arith.constant 0 : index
    %12 = vector.load %arg6[%c0_12, %c0_13] : memref<1x32xf32, #tpu.memory_space<vmem>>, vector<1x32xf32>
    %13 = vector.broadcast %12 : vector<1x32xf32> to vector<8x32xf32>
    %14 = arith.addf %11, %13 : vector<8x32xf32>
    %c0_14 = arith.constant 0 : index
    %c0_15 = arith.constant 0 : index
    %c0_16 = arith.constant 0 : index
    %15 = vector.load %arg8[%c0_14, %c0_15, %c0_16] : memref<1x8x32xf32, #tpu.memory_space<vmem>>, vector<1x8x32xf32>
    %16 = vector.shape_cast %15 : vector<1x8x32xf32> to vector<8x32xf32>
    %17 = vector.shape_cast %14 : vector<8x32xf32> to vector<1x8x32xf32>
    tpu.vector_store %arg8[%c0_14, %c0_15, %c0_16], %17 {strides = array<i32>} : memref<1x8x32xf32, #tpu.memory_space<vmem>>, vector<1x8x32xf32>,
    return
  }
  func.func @transform_0(%arg0: i32, %arg1: i32) -> (i32, i32, i32) {
    %c0_i32 = arith.constant 0 : i32
    %c0_i32_0 = arith.constant 0 : i32
    return %arg0, %arg1, %c0_i32 : i32, i32, i32
  }
  func.func @transform_1(%arg0: i32, %arg1: i32) -> (i32, i32) {
    %c0_i32 = arith.constant 0 : i32
    %c0_i32_0 = arith.constant 0 : i32
    %c0_i32_1 = arith.constant 0 : i32
    return %c0_i32, %c0_i32_0 : i32, i32
  }
  func.func @transform_2(%arg0: i32, %arg1: i32) -> (i32, i32) {
    %c0_i32 = arith.constant 0 : i32
    %c0_i32_0 = arith.constant 0 : i32
    %c0_i32_1 = arith.constant 0 : i32
    return %c0_i32, %c0_i32_0 : i32, i32
  }
  func.func @transform_3(%arg0: i32, %arg1: i32) -> (i32, i32) {
    %c0_i32 = arith.constant 0 : i32
    %c0_i32_0 = arith.constant 0 : i32
    %c0_i32_1 = arith.constant 0 : i32
    return %c0_i32, %c0_i32_0 : i32, i32
  }
  func.func @transform_4(%arg0: i32, %arg1: i32) -> (i32, i32) {
    %c0_i32 = arith.constant 0 : i32
    %c0_i32_0 = arith.constant 0 : i32
    %c0_i32_1 = arith.constant 0 : i32
    return %c0_i32, %c0_i32_0 : i32, i32
  }
  func.func @transform_5(%arg0: i32, %arg1: i32) -> (i32, i32, i32) {
    %c0_i32 = arith.constant 0 : i32
    %c0_i32_0 = arith.constant 0 : i32
    return %arg0, %arg1, %c0_i32 : i32, i32, i32
  }
  func.func @transform_6(%arg0: i32, %arg1: i32) -> (i32, i32, i32) {
    %c0_i32 = arith.constant 0 : i32
    %c0_i32_0 = arith.constant 0 : i32
    return %arg0, %arg1, %c0_i32 : i32, i32, i32
  }
}

</mosaic_0001>

<llo_original>
// kernel: tpu_custom_call.1
$region0: #{tpu_custom_call.1}
  #allocation0 [shape = 'u32[]', space=smem, size = 0x4, offset = 0x4, fixed_abs, tag = 'smem constant byte address 0x4 - core index']
  #allocation1 [shape = 'u32[144,128]{1,0:T(1,128)}', space=vmem, size = 0x12000, scoped, tag = 'internal scratch']
  %s0 = inlined_call_operand.hbm [shape: f32[2,8,32], index: 0, kind: input, shape index: {}]
  %s1 = inlined_call_operand.hbm [shape: f32[32,32], index: 1, kind: input, shape index: {}]
  %s2 = inlined_call_operand.hbm [shape: f32[1,32], index: 2, kind: input, shape index: {}]
  %s3 = inlined_call_operand.hbm [shape: f32[32,32], index: 3, kind: input, shape index: {}]
  %s4 = inlined_call_operand.hbm [shape: f32[1,32], index: 4, kind: input, shape index: {}]
  %s5 = inlined_call_operand.hbm [shape: f32[2,8,32], index: 5, kind: output, shape index: {0}]
  %s6 = inlined_call_operand.hbm [shape: f32[2,8,32], index: 6, kind: output, shape index: {1}]
  %7 = xla_tuple %s5, %s6
  %s8 = sld [smem:[#allocation0]]
  $region81: #{tpu_custom_call.1} parent=0
    _
  %s10 = ssub.s32 1, %s8
  %s11 = scalar_select 0, %s10, %s8
  $region1: #{tpu_custom_call.1} parent=0
    #allocation2 [shape = 'u8[8192]{0}', space=vmem, size = 0x2000, scoped, tag = 'input window, operand 0']
    #allocation3 [shape = 's32[2]{0}', space=sflag, size = 0x8, scoped, tag = 'scoped memory for tpu_custom_call.1']
    #allocation4 [shape = 's32[2]{0}', space=sflag, size = 0x8, scoped, tag = 'scoped memory for tpu_custom_call.1']
    #allocation5 [shape = 'u8[16384]{0}', space=vmem, size = 0x4000, scoped, tag = 'input window, operand 1, single buffered']
    #allocation6 [shape = 's32[1]{0}', space=sflag, size = 0x4, scoped, tag = 'scoped memory for tpu_custom_call.1']
    #allocation7 [shape = 'u8[512]{0}', space=vmem, size = 0x400, scoped, tag = 'input window, operand 2, single buffered']
    #allocation8 [shape = 'u8[16384]{0}', space=vmem, size = 0x4000, scoped, tag = 'input window, operand 3, single buffered']
    #allocation9 [shape = 's32[1]{0}', space=sflag, size = 0x4, scoped, tag = 'scoped memory for tpu_custom_call.1']
    #allocation10 [shape = 'u8[512]{0}', space=vmem, size = 0x400, scoped, tag = 'input window, operand 4, single buffered']
    #allocation11 [shape = 'u8[8192]{0}', space=vmem, size = 0x2000, scoped, tag = 'output window, operand 0']
    #allocation12 [shape = 'u8[8192]{0}', space=vmem, size = 0x2000, scoped, tag = 'output window, operand 1']
    #allocation13 [shape = 's32[2]{0}', space=sflag, size = 0x8, scoped, tag = 'scoped memory for tpu_custom_call.1']
    %12 = vsyncpa [#allocation3], 0
    %s13 = scalar_lea.sflag [#allocation3], 1
    %14 = vsyncpa %s13, 0
    %15 = vsyncpa [#allocation6], 0
    %16 = vsyncpa [#allocation9], 0
    %17 = vsyncpa [#allocation4], 0
    %s18 = scalar_lea.sflag [#allocation4], 1
    %19 = vsyncpa %s18, 0
    %20 = vsyncpa [#allocation13], 0
    %s21 = scalar_lea.sflag [#allocation13], 1
    %22 = vsyncpa %s21, 0
    loop: start=0, step=1, limit=4
    $region2: #{tpu_custom_call.1} parent=1 // loop_pre_header
      _
    $region3: #{tpu_custom_call.1} parent=1 // loop_header
      %s24 = sphi 0, %s28
      %p25 = scmp.ge.s32.totalorder %s24, 4
      %s31 = sphi 0, %s43
      %s32 = sphi 0, %s39
      %s33 = sphi 0, %s31
      %s34 = sphi 0, %s32
      %s35 = sphi 0, %s33
      %s36 = sphi 0, %s34
      %s48 = sphi 0, %s50
      %s51 = sphi 0, %s48
      %s52 = sphi 0, %s51
      %s68 = sphi 0, %s52
      %s72 = sphi 0, %s72
      %s74 = sphi 0, %s72
      %s75 = sphi 0, %s74
      %s89 = sphi 0, %s75
      %s93 = sphi 0, %s93
      %s95 = sphi 0, %s93
      %s96 = sphi 0, %s95
      %s110 = sphi 0, %s96
      %s114 = sphi 0, %s114
      %s116 = sphi 0, %s114
      %s117 = sphi 0, %s116
      %s131 = sphi 0, %s117
      %s135 = sphi 0, %s135
      %s137 = sphi 0, %s135
      %s138 = sphi 0, %s137
      %s152 = sphi 0, %s138
      %s160 = sphi 0, %s162
      %s163 = sphi 0, %s160
      %s164 = sphi 0, %s163
      %s180 = sphi 0, %s164
      %s188 = sphi 0, %s190
      %s191 = sphi 0, %s188
      %s192 = sphi 0, %s191
      %s208 = sphi 0, %s192
    $region4: #{tpu_custom_call.1} parent=1 // loop_header_branch
      %27 = sbr.rel (%p25) target = $region8
    $region5: #{tpu_custom_call.1} parent=1 // loop_body
      %s29 = ssub.s32 %s24, 1
      %s30 = ssub.s32 %s24, 2
      %s37 = sadd.s32 1, %s32
      %p38 = scmp.ge.s32.totalorder %s37, 1
      %s39 = scalar_select %p38, 0, %s37
      %s40 = sadd.s32 1, %s31
      %s41 = scalar_select %p38, %s40, %s31
      %p42 = scmp.ge.s32.totalorder %s41, 2
      %s43 = scalar_select %p42, 0, %s41
      %s44 = ssub.s32 %s31, %s43
      %s45 = ssub.s32 %s32, %s39
      %s46 = sor.u32 %s44, %s45
      %p47 = scmp.eq.s32.totalorder %s46, 0
      %s49 = sadd.s32 %s48, 1
      %s50 = scalar_select %p47, %s48, %s49
      %p53 = pneg %p47
      %p54 = scmp.eq.s32.totalorder %s24, 1
      %p55 = por %p53, %p54
      %p56 = scmp.ne.s32.totalorder %s48, %s51
      %p57 = scmp.eq.s32.totalorder %s24, 0
      %p58 = por %p56, %p57
      %p59 = scmp.ne.s32.totalorder %s48, %s51
      %p60 = scmp.eq.s32.totalorder %s29, 1
      %p61 = por %p59, %p60
      %p62 = scmp.ne.s32.totalorder %s51, %s52
      %p63 = scmp.eq.s32.totalorder %s29, 0
      %p64 = por %p62, %p63
      %p65 = scmp.ne.s32.totalorder %s51, %s52
      %p66 = scmp.eq.s32.totalorder %s30, 1
      %p67 = por %p65, %p66
      %p69 = scmp.ne.s32.totalorder %s52, %s68
      %p70 = scmp.eq.s32.totalorder %s30, 0
      %p71 = por %p69, %p70
      %s73 = sadd.s32 %s72, 1
      %p76 = scmp.eq.s32.totalorder %s24, 1
      %p77 = scmp.ne.s32.totalorder %s72, %s74
      %p78 = scmp.eq.s32.totalorder %s24, 0
      %p79 = por %p77, %p78
      %p80 = scmp.ne.s32.totalorder %s72, %s74
      %p81 = scmp.eq.s32.totalorder %s29, 1
      %p82 = por %p80, %p81
      %p83 = scmp.ne.s32.totalorder %s74, %s75
      %p84 = scmp.eq.s32.totalorder %s29, 0
      %p85 = por %p83, %p84
      %p86 = scmp.ne.s32.totalorder %s74, %s75
      %p87 = scmp.eq.s32.totalorder %s30, 1
      %p88 = por %p86, %p87
      %p90 = scmp.ne.s32.totalorder %s75, %s89
      %p91 = scmp.eq.s32.totalorder %s30, 0
      %p92 = por %p90, %p91
      %s94 = sadd.s32 %s93, 1
      %p97 = scmp.eq.s32.totalorder %s24, 1
      %p98 = scmp.ne.s32.totalorder %s93, %s95
      %p99 = scmp.eq.s32.totalorder %s24, 0
      %p100 = por %p98, %p99
      %p101 = scmp.ne.s32.totalorder %s93, %s95
      %p102 = scmp.eq.s32.totalorder %s29, 1
      %p103 = por %p101, %p102
      %p104 = scmp.ne.s32.totalorder %s95, %s96
      %p105 = scmp.eq.s32.totalorder %s29, 0
      %p106 = por %p104, %p105
      %p107 = scmp.ne.s32.totalorder %s95, %s96
      %p108 = scmp.eq.s32.totalorder %s30, 1
      %p109 = por %p107, %p108
      %p111 = scmp.ne.s32.totalorder %s96, %s110
      %p112 = scmp.eq.s32.totalorder %s30, 0
      %p113 = por %p111, %p112
      %s115 = sadd.s32 %s114, 1
      %p118 = scmp.eq.s32.totalorder %s24, 1
      %p119 = scmp.ne.s32.totalorder %s114, %s116
      %p120 = scmp.eq.s32.totalorder %s24, 0
      %p121 = por %p119, %p120
      %p122 = scmp.ne.s32.totalorder %s114, %s116
      %p123 = scmp.eq.s32.totalorder %s29, 1
      %p124 = por %p122, %p123
      %p125 = scmp.ne.s32.totalorder %s116, %s117
      %p126 = scmp.eq.s32.totalorder %s29, 0
      %p127 = por %p125, %p126
      %p128 = scmp.ne.s32.totalorder %s116, %s117
      %p129 = scmp.eq.s32.totalorder %s30, 1
      %p130 = por %p128, %p129
      %p132 = scmp.ne.s32.totalorder %s117, %s131
      %p133 = scmp.eq.s32.totalorder %s30, 0
      %p134 = por %p132, %p133
      %s136 = sadd.s32 %s135, 1
      %p139 = scmp.eq.s32.totalorder %s24, 1
      %p140 = scmp.ne.s32.totalorder %s135, %s137
      %p141 = scmp.eq.s32.totalorder %s24, 0
      %p142 = por %p140, %p141
      %p143 = scmp.ne.s32.totalorder %s135, %s137
      %p144 = scmp.eq.s32.totalorder %s29, 1
      %p145 = por %p143, %p144
      %p146 = scmp.ne.s32.totalorder %s137, %s138
      %p147 = scmp.eq.s32.totalorder %s29, 0
      %p148 = por %p146, %p147
      %p149 = scmp.ne.s32.totalorder %s137, %s138
      %p150 = scmp.eq.s32.totalorder %s30, 1
      %p151 = por %p149, %p150
      %p153 = scmp.ne.s32.totalorder %s138, %s152
      %p154 = scmp.eq.s32.totalorder %s30, 0
      %p155 = por %p153, %p154
      %s156 = ssub.s32 %s31, %s43
      %s157 = ssub.s32 %s32, %s39
      %s158 = sor.u32 %s156, %s157
      %p159 = scmp.eq.s32.totalorder %s158, 0
      %s161 = sadd.s32 %s160, 1
      %s162 = scalar_select %p159, %s160, %s161
      %p165 = pneg %p159
      %p166 = scmp.eq.s32.totalorder %s24, 1
      %p167 = por %p165, %p166
      %p168 = scmp.ne.s32.totalorder %s160, %s163
      %p169 = scmp.eq.s32.totalorder %s24, 0
      %p170 = por %p168, %p169
      %p171 = scmp.ne.s32.totalorder %s160, %s163
      %p172 = scmp.eq.s32.totalorder %s29, 1
      %p173 = por %p171, %p172
      %p174 = scmp.ne.s32.totalorder %s163, %s164
      %p175 = scmp.eq.s32.totalorder %s29, 0
      %p176 = por %p174, %p175
      %p177 = scmp.ne.s32.totalorder %s163, %s164
      %p178 = scmp.eq.s32.totalorder %s30, 1
      %p179 = por %p177, %p178
      %p181 = scmp.ne.s32.totalorder %s164, %s180
      %p182 = scmp.eq.s32.totalorder %s30, 0
      %p183 = por %p181, %p182
      %s184 = ssub.s32 %s31, %s43
      %s185 = ssub.s32 %s32, %s39
      %s186 = sor.u32 %s184, %s185
      %p187 = scmp.eq.s32.totalorder %s186, 0
      %s189 = sadd.s32 %s188, 1
      %s190 = scalar_select %p187, %s188, %s189
      %p193 = pneg %p187
      %p194 = scmp.eq.s32.totalorder %s24, 1
      %p195 = por %p193, %p194
      %p196 = scmp.ne.s32.totalorder %s188, %s191
      %p197 = scmp.eq.s32.totalorder %s24, 0
      %p198 = por %p196, %p197
      %p199 = scmp.ne.s32.totalorder %s188, %s191
      %p200 = scmp.eq.s32.totalorder %s29, 1
      %p201 = por %p199, %p200
      %p202 = scmp.ne.s32.totalorder %s191, %s192
      %p203 = scmp.eq.s32.totalorder %s29, 0
      %p204 = por %p202, %p203
      %p205 = scmp.ne.s32.totalorder %s191, %s192
      %p206 = scmp.eq.s32.totalorder %s30, 1
      %p207 = por %p205, %p206
      %p209 = scmp.ne.s32.totalorder %s192, %s208
      %p210 = scmp.eq.s32.totalorder %s30, 0
      %p211 = por %p209, %p210
      %p212 = scmp.le.s32.totalorder 1, %s24
      %p213 = scmp.lt.s32.totalorder %s24, 3
      %p214 = pnand %p212, %p213
      %p215 = pneg %p214
      // Predicated region
      $region9: #{tpu_custom_call.1} parent=5 // pred_check
        _
      $region10: #{tpu_custom_call.1} parent=5 // pred_check_branch
        %217 = sbr.rel (%p214) target = $region12
      $region11: #{tpu_custom_call.1} parent=5 // pred_region
        %s218 = ssub.s32 %s24, 1
        // Predicated region
        $region13: #{tpu_custom_call.1} parent=11 // pred_check
          %p219 = pneg %p85
        $region14: #{tpu_custom_call.1} parent=11 // pred_check_branch
          %221 = sbr.rel (%p219) target = $region16
        $region15: #{tpu_custom_call.1} parent=11 // pred_region
          %s223 = ssub.s32 512, 512
          %224 = vsyncadd [#allocation6], %s223
          %s225 = sshll.u32 [#allocation5], 4
          %s226 = int_to_ptr.vmem [resolvable:$true] %s225
          %231 = dma.hbm_to_vmem [thread:$0]  %s1, 512, %s226, [#allocation6], 128, 128, 8
        $region16: #{tpu_custom_call.1} parent=11 // pred_fallthru
          _
        // Predicated region
        $region17: #{tpu_custom_call.1} parent=11 // pred_check
          %p232 = pneg %p106
        $region18: #{tpu_custom_call.1} parent=11 // pred_check_branch
          %234 = sbr.rel (%p232) target = $region20
        $region19: #{tpu_custom_call.1} parent=11 // pred_region
          %s236 = ssub.s32 16, 16
          %237 = vsyncadd [#allocation6], %s236
          %s239 = sshll.u32 [#allocation7], 4
          %s240 = int_to_ptr.vmem [resolvable:$true] %s239
          %242 = dma.hbm_to_vmem [thread:$0]  %s2, 16, %s240, [#allocation6]
        $region20: #{tpu_custom_call.1} parent=11 // pred_fallthru
          _
        // Predicated region
        $region21: #{tpu_custom_call.1} parent=11 // pred_check
          %p243 = pneg %p127
        $region22: #{tpu_custom_call.1} parent=11 // pred_check_branch
          %245 = sbr.rel (%p243) target = $region24
        $region23: #{tpu_custom_call.1} parent=11 // pred_region
          %s247 = ssub.s32 512, 512
          %248 = vsyncadd [#allocation9], %s247
          %s249 = sshll.u32 [#allocation8], 4
          %s250 = int_to_ptr.vmem [resolvable:$true] %s249
          %255 = dma.hbm_to_vmem [thread:$0]  %s3, 512, %s250, [#allocation9], 128, 128, 8
        $region24: #{tpu_custom_call.1} parent=11 // pred_fallthru
          _
        // Predicated region
        $region25: #{tpu_custom_call.1} parent=11 // pred_check
          %p256 = pneg %p148
        $region26: #{tpu_custom_call.1} parent=11 // pred_check_branch
          %258 = sbr.rel (%p256) target = $region28
        $region27: #{tpu_custom_call.1} parent=11 // pred_region
          %s260 = ssub.s32 16, 16
          %261 = vsyncadd [#allocation9], %s260
          %s263 = sshll.u32 [#allocation10], 4
          %s264 = int_to_ptr.vmem [resolvable:$true] %s263
          %266 = dma.hbm_to_vmem [thread:$0]  %s4, 16, %s264, [#allocation9]
        $region28: #{tpu_custom_call.1} parent=11 // pred_fallthru
          _
      $region12: #{tpu_custom_call.1} parent=5 // pred_fallthru
        _
      %p267 = scmp.lt.s32.totalorder %s24, 2
      // Predicated region
      $region29: #{tpu_custom_call.1} parent=5 // pred_check
        %p268 = pneg %p267
      $region30: #{tpu_custom_call.1} parent=5 // pred_check_branch
        %270 = sbr.rel (%p268) target = $region32
      $region31: #{tpu_custom_call.1} parent=5 // pred_region
        // Predicated region
        $region33: #{tpu_custom_call.1} parent=31 // pred_check
          %p271 = pneg %p58
        $region34: #{tpu_custom_call.1} parent=31 // pred_check_branch
          %273 = sbr.rel (%p271) target = $region36
        $region35: #{tpu_custom_call.1} parent=31 // pred_region
          %s274 = sand.u32 %s48, 1
          %s275 = scalar_lea.sflag [#allocation3], %s274
          %s276 = sand.u32 %s48, 1
          %s277 = smul.addr %s276, 8
          %s278 = scalar_lea.vmem [#allocation2], %s277
          %s280 = ssub.s32 128, 128
          %281 = vsyncadd %s275, %s280
          %s282 = sadd.s32 %s32, %s31
          %s283 = smul.addr %s282, 128
          %s284 = scalar_lea.hbm %s0, %s283
          %s286 = sshll.u32 %s278, 4
          %s287 = int_to_ptr.vmem [resolvable:$true] %s286
          %289 = dma.hbm_to_vmem [thread:$0]  %s284, 128, %s287, %s275
        $region36: #{tpu_custom_call.1} parent=31 // pred_fallthru
          _
      $region32: #{tpu_custom_call.1} parent=5 // pred_fallthru
        _
      %p290 = scmp.le.s32.totalorder 1, %s24
      %p291 = scmp.lt.s32.totalorder %s24, 3
      %p292 = pnand %p290, %p291
      %p293 = pneg %p292
      // Predicated region
      $region37: #{tpu_custom_call.1} parent=5 // pred_check
        _
      $region38: #{tpu_custom_call.1} parent=5 // pred_check_branch
        %295 = sbr.rel (%p292) target = $region40
      $region39: #{tpu_custom_call.1} parent=5 // pred_region
        %s296 = ssub.s32 %s24, 1
        %s297 = sand.u32 %s51, 1
        %s298 = scalar_lea.sflag [#allocation3], %s297
        %s299 = sand.u32 %s51, 1
        %s300 = smul.addr %s299, 8
        %s301 = scalar_lea.vmem [#allocation2], %s300
        // Predicated region
        $region41: #{tpu_custom_call.1} parent=39 // pred_check
          %p302 = pneg %p64
        $region42: #{tpu_custom_call.1} parent=39 // pred_check_branch
          %304 = sbr.rel (%p302) target = $region44
        $region43: #{tpu_custom_call.1} parent=39 // pred_region
          %305 = dma.done %s298, 128
        $region44: #{tpu_custom_call.1} parent=39 // pred_fallthru
          _
        // Predicated region
        $region45: #{tpu_custom_call.1} parent=39 // pred_check
          %p306 = pneg %p85
        $region46: #{tpu_custom_call.1} parent=39 // pred_check_branch
          %308 = sbr.rel (%p306) target = $region48
        $region47: #{tpu_custom_call.1} parent=39 // pred_region
          %309 = dma.done [#allocation6], 512
        $region48: #{tpu_custom_call.1} parent=39 // pred_fallthru
          _
        // Predicated region
        $region49: #{tpu_custom_call.1} parent=39 // pred_check
          %p310 = pneg %p106
        $region50: #{tpu_custom_call.1} parent=39 // pred_check_branch
          %312 = sbr.rel (%p310) target = $region52
        $region51: #{tpu_custom_call.1} parent=39 // pred_region
          %313 = dma.done [#allocation6], 16
        $region52: #{tpu_custom_call.1} parent=39 // pred_fallthru
          _
        // Predicated region
        $region53: #{tpu_custom_call.1} parent=39 // pred_check
          %p314 = pneg %p127
        $region54: #{tpu_custom_call.1} parent=39 // pred_check_branch
          %316 = sbr.rel (%p314) target = $region56
        $region55: #{tpu_custom_call.1} parent=39 // pred_region
          %317 = dma.done [#allocation9], 512
        $region56: #{tpu_custom_call.1} parent=39 // pred_fallthru
          _
        // Predicated region
        $region57: #{tpu_custom_call.1} parent=39 // pred_check
          %p318 = pneg %p148
        $region58: #{tpu_custom_call.1} parent=39 // pred_check_branch
          %320 = sbr.rel (%p318) target = $region60
        $region59: #{tpu_custom_call.1} parent=39 // pred_region
          %321 = dma.done [#allocation9], 16
        $region60: #{tpu_custom_call.1} parent=39 // pred_fallthru
          _
        %s322 = sand.u32 %s51, 1
        %s323 = scalar_lea.sflag [#allocation3], %s322
        %s324 = sand.u32 %s51, 1
        %s325 = smul.addr %s324, 8
        %s326 = scalar_lea.vmem [#allocation2], %s325
        %p327 = pneg %p64
        %p328 = pneg %p61
        %p329 = pneg %p85
        %p330 = pneg %p82
        %p331 = pneg %p106
        %p332 = pneg %p103
        %p333 = pneg %p127
        %p334 = pneg %p124
        %p335 = pneg %p148
        %p336 = pneg %p145
        %p337 = pneg %p176
        %p338 = pneg %p173
        %s339 = sand.u32 %s163, 1
        %s340 = scalar_lea.sflag [#allocation4], %s339
        %s341 = sand.u32 %s163, 1
        %s342 = smul.addr %s341, 8
        %s343 = scalar_lea.vmem [#allocation11], %s342
        %p344 = pneg %p204
        %p345 = pneg %p201
        %s346 = sand.u32 %s191, 1
        %s347 = scalar_lea.sflag [#allocation13], %s346
        %s348 = sand.u32 %s191, 1
        %s349 = smul.addr %s348, 8
        %s350 = scalar_lea.vmem [#allocation12], %s349
        %v351 = vld [vmem:[%s301] sm:$0xff]
        %v352 = vld [vmem:[#allocation5] sm:$0xff]
        %v353 = vld [vmem:[#allocation5 + $0x8] sm:$0xff]
        %v354 = vld [vmem:[#allocation5 + $0x10] sm:$0xff]
        %v355 = vld [vmem:[#allocation5 + $0x18] sm:$0xff]
        %v356 = vld [vmem:[#allocation7] sm:$0x1]
        %v358 = vlaneseq
        %v359 = vshrl.u32 %v358, 7
        %v360 = vsub.s32 0, %v359
        %v361 = vrot.slane %v356, %v360
        %vm363 = vcmask 261120
        %v365 = vsel %vm363, %v351, 0
        %367 = vmatprep.subr.mxu0 0.0
        %368 = vmatpush1.msra.mxu0 %v352
        %369 = vmatprep.subr.mxu0 0.0
        %370 = vmatpush1.msra.mxu0 %v353
        %371 = vmatprep.subr.mxu0 0.0
        %372 = vmatpush1.msra.mxu0 %v354
        %373 = vmatprep.subr.mxu0 0.0
        %374 = vmatpush1.msra.mxu0 %v355
        %375 = vmatprep.subr.mxu0 0.0
        %376 = vmatpush1.msra.mxu0 0.0
        %377 = vmatprep.subr.mxu0 0.0
        %378 = vmatpush1.msra.mxu0 0.0
        %379 = vmatprep.subr.mxu0 0.0
        %380 = vmatpush1.msra.mxu0 0.0
        %381 = vmatprep.subr.mxu0 0.0
        %382 = vmatpush1.msra.mxu0 0.0
        %383 = vmatprep.subr.mxu0 0.0
        %384 = vmatpush1.msra.mxu0 0.0
        %385 = vmatprep.subr.mxu0 0.0
        %386 = vmatpush1.msra.mxu0 0.0
        %387 = vmatprep.subr.mxu0 0.0
        %388 = vmatpush1.msra.mxu0 0.0
        %389 = vmatprep.subr.mxu0 0.0
        %390 = vmatpush1.msra.mxu0 0.0
        %391 = vmatprep.subr.mxu0 0.0
        %392 = vmatpush1.msra.mxu0 0.0
        %393 = vmatprep.subr.mxu0 0.0
        %394 = vmatpush1.msra.mxu0 0.0
        %395 = vmatprep.subr.mxu0 0.0
        %396 = vmatpush1.msra.mxu0 0.0
        %397 = vmatprep.subr.mxu0 0.0
        %398 = vmatpush1.msra.mxu0 0.0
        %399 = vmatprep.subr.mxu0 0.0
        %400 = vmatpush1.msra.mxu0 0.0
        %401 = vmatprep.subr.mxu0 0.0
        %402 = vmatpush1.msra.mxu0 0.0
        %403 = vmatprep.subr.mxu0 0.0
        %404 = vmatpush1.msra.mxu0 0.0
        %405 = vmatprep.subr.mxu0 0.0
        %406 = vmatpush1.msra.mxu0 0.0
        %407 = vmatprep.subr.mxu0 0.0
        %408 = vmatpush1.msra.mxu0 0.0
        %409 = vmatprep.subr.mxu0 0.0
        %410 = vmatpush1.msra.mxu0 0.0
        %411 = vmatprep.subr.mxu0 0.0
        %412 = vmatpush1.msra.mxu0 0.0
        %413 = vmatprep.subr.mxu0 0.0
        %414 = vmatpush1.msra.mxu0 0.0
        %415 = vmatprep.subr.mxu0 0.0
        %416 = vmatpush1.msra.mxu0 0.0
        %417 = vmatprep.subr.mxu0 0.0
        %418 = vmatpush1.msra.mxu0 0.0
        %419 = vmatprep.subr.mxu0 0.0
        %420 = vmatpush1.msra.mxu0 0.0
        %421 = vmatprep.subr.mxu0 0.0
        %422 = vmatpush1.msra.mxu0 0.0
        %423 = vmatprep.subr.mxu0 0.0
        %424 = vmatpush1.msra.mxu0 0.0
        %425 = vmatprep.subr.mxu0 0.0
        %426 = vmatpush1.msra.mxu0 0.0
        %427 = vmatprep.subr.mxu0 0.0
        %428 = vmatpush1.msra.mxu0 0.0
        %429 = vmatprep.subr.mxu0 0.0
        %430 = vmatpush1.msra.mxu0 0.0
        %431 = vmatprep.mubr.f32.mxu0 0.0
        %432 = vmatmul.mubr.f32.gmra.mrb[0].mxu0 %v365
        %v433 = vpop.f32.mrb[0].mxu0
        %v434 = vadd.f32 %v361, %v433
        %v435 = vpop.f32.mrb[0].mxu0
        %436 = vdwg.mxu0
        %437 = vst.msk [vmem:[%s343] sm:$0xff] %vm363, %v434
        %v438 = vld [vmem:[#allocation8] sm:$0xff]
        %v439 = vld [vmem:[#allocation8 + $0x8] sm:$0xff]
        %v440 = vld [vmem:[#allocation8 + $0x10] sm:$0xff]
        %v441 = vld [vmem:[#allocation8 + $0x18] sm:$0xff]
        %v442 = vld [vmem:[#allocation10] sm:$0x1]
        %v444 = vlaneseq
        %v445 = vshrl.u32 %v444, 7
        %v446 = vsub.s32 0, %v445
        %v447 = vrot.slane %v442, %v446
        %449 = vmatprep.subr.mxu0 0.0
        %450 = vmatpush1.msra.mxu0 %v438
        %451 = vmatprep.subr.mxu0 0.0
        %452 = vmatpush1.msra.mxu0 %v439
        %453 = vmatprep.subr.mxu0 0.0
        %454 = vmatpush1.msra.mxu0 %v440
        %455 = vmatprep.subr.mxu0 0.0
        %456 = vmatpush1.msra.mxu0 %v441
        %457 = vmatprep.subr.mxu0 0.0
        %458 = vmatpush1.msra.mxu0 0.0
        %459 = vmatprep.subr.mxu0 0.0
        %460 = vmatpush1.msra.mxu0 0.0
        %461 = vmatprep.subr.mxu0 0.0
        %462 = vmatpush1.msra.mxu0 0.0
        %463 = vmatprep.subr.mxu0 0.0
        %464 = vmatpush1.msra.mxu0 0.0
        %465 = vmatprep.subr.mxu0 0.0
        %466 = vmatpush1.msra.mxu0 0.0
        %467 = vmatprep.subr.mxu0 0.0
        %468 = vmatpush1.msra.mxu0 0.0
        %469 = vmatprep.subr.mxu0 0.0
        %470 = vmatpush1.msra.mxu0 0.0
        %471 = vmatprep.subr.mxu0 0.0
        %472 = vmatpush1.msra.mxu0 0.0
        %473 = vmatprep.subr.mxu0 0.0
        %474 = vmatpush1.msra.mxu0 0.0
        %475 = vmatprep.subr.mxu0 0.0
        %476 = vmatpush1.msra.mxu0 0.0
        %477 = vmatprep.subr.mxu0 0.0
        %478 = vmatpush1.msra.mxu0 0.0
        %479 = vmatprep.subr.mxu0 0.0
        %480 = vmatpush1.msra.mxu0 0.0
        %481 = vmatprep.subr.mxu0 0.0
        %482 = vmatpush1.msra.mxu0 0.0
        %483 = vmatprep.subr.mxu0 0.0
        %484 = vmatpush1.msra.mxu0 0.0
        %485 = vmatprep.subr.mxu0 0.0
        %486 = vmatpush1.msra.mxu0 0.0
        %487 = vmatprep.subr.mxu0 0.0
        %488 = vmatpush1.msra.mxu0 0.0
        %489 = vmatprep.subr.mxu0 0.0
        %490 = vmatpush1.msra.mxu0 0.0
        %491 = vmatprep.subr.mxu0 0.0
        %492 = vmatpush1.msra.mxu0 0.0
        %493 = vmatprep.subr.mxu0 0.0
        %494 = vmatpush1.msra.mxu0 0.0
        %495 = vmatprep.subr.mxu0 0.0
        %496 = vmatpush1.msra.mxu0 0.0
        %497 = vmatprep.subr.mxu0 0.0
        %498 = vmatpush1.msra.mxu0 0.0
        %499 = vmatprep.subr.mxu0 0.0
        %500 = vmatpush1.msra.mxu0 0.0
        %501 = vmatprep.subr.mxu0 0.0
        %502 = vmatpush1.msra.mxu0 0.0
        %503 = vmatprep.subr.mxu0 0.0
        %504 = vmatpush1.msra.mxu0 0.0
        %505 = vmatprep.subr.mxu0 0.0
        %506 = vmatpush1.msra.mxu0 0.0
        %507 = vmatprep.subr.mxu0 0.0
        %508 = vmatpush1.msra.mxu0 0.0
        %509 = vmatprep.subr.mxu0 0.0
        %510 = vmatpush1.msra.mxu0 0.0
        %511 = vmatprep.subr.mxu0 0.0
        %512 = vmatpush1.msra.mxu0 0.0
        %513 = vmatprep.mubr.f32.mxu0 0.0
        %514 = vmatmul.mubr.f32.gmra.mrb[0].mxu0 %v365
        %v515 = vpop.f32.mrb[0].mxu0
        %v516 = vadd.f32 %v447, %v515
        %v517 = vpop.f32.mrb[0].mxu0
        %518 = vdwg.mxu0
        %519 = vst.msk [vmem:[%s350] sm:$0xff] %vm363, %v516
        %s520 = sand.u32 %s163, 1
        %s521 = scalar_lea.sflag [#allocation4], %s520
        %s522 = sand.u32 %s163, 1
        %s523 = smul.addr %s522, 8
        %s524 = scalar_lea.vmem [#allocation11], %s523
        %s525 = sand.u32 %s191, 1
        %s526 = scalar_lea.sflag [#allocation13], %s525
        %s527 = sand.u32 %s191, 1
        %s528 = smul.addr %s527, 8
        %s529 = scalar_lea.vmem [#allocation12], %s528
        // Predicated region
        $region61: #{tpu_custom_call.1} parent=39 // pred_check
          %p530 = pneg %p173
        $region62: #{tpu_custom_call.1} parent=39 // pred_check_branch
          %532 = sbr.rel (%p530) target = $region64
        $region63: #{tpu_custom_call.1} parent=39 // pred_region
          %s534 = ssub.s32 128, 128
          %535 = vsyncadd %s521, %s534
          %s536 = sadd.s32 %s34, %s33
          %s537 = smul.addr %s536, 128
          %s538 = scalar_lea.hbm %s5, %s537
          %s540 = sshll.u32 %s524, 4
          %s541 = int_to_ptr.vmem [resolvable:$true] %s540
          %543 = dma.vmem_to_hbm [thread:$0]  %s541, 128, %s538, %s521
        $region64: #{tpu_custom_call.1} parent=39 // pred_fallthru
          _
        // Predicated region
        $region65: #{tpu_custom_call.1} parent=39 // pred_check
          %p544 = pneg %p201
        $region66: #{tpu_custom_call.1} parent=39 // pred_check_branch
          %546 = sbr.rel (%p544) target = $region68
        $region67: #{tpu_custom_call.1} parent=39 // pred_region
          %s548 = ssub.s32 128, 128
          %549 = vsyncadd %s526, %s548
          %s550 = sadd.s32 %s34, %s33
          %s551 = smul.addr %s550, 128
          %s552 = scalar_lea.hbm %s6, %s551
          %s554 = sshll.u32 %s529, 4
          %s555 = int_to_ptr.vmem [resolvable:$true] %s554
          %557 = dma.vmem_to_hbm [thread:$0]  %s555, 128, %s552, %s526
        $region68: #{tpu_custom_call.1} parent=39 // pred_fallthru
          _
      $region40: #{tpu_custom_call.1} parent=5 // pred_fallthru
        _
      %p558 = scmp.le.s32.totalorder 2, %s24
      // Predicated region
      $region69: #{tpu_custom_call.1} parent=5 // pred_check
        %p559 = pneg %p558
      $region70: #{tpu_custom_call.1} parent=5 // pred_check_branch
        %561 = sbr.rel (%p559) target = $region72
      $region71: #{tpu_custom_call.1} parent=5 // pred_region
        %s562 = ssub.s32 %s24, 2
        // Predicated region
        $region73: #{tpu_custom_call.1} parent=71 // pred_check
          %p563 = pneg %p179
        $region74: #{tpu_custom_call.1} parent=71 // pred_check_branch
          %565 = sbr.rel (%p563) target = $region76
        $region75: #{tpu_custom_call.1} parent=71 // pred_region
          %s566 = sand.u32 %s164, 1
          %s567 = scalar_lea.sflag [#allocation4], %s566
          %s568 = sand.u32 %s164, 1
          %s569 = smul.addr %s568, 8
          %s570 = scalar_lea.vmem [#allocation11], %s569
          %571 = dma.done %s567, 128
        $region76: #{tpu_custom_call.1} parent=71 // pred_fallthru
          _
        // Predicated region
        $region77: #{tpu_custom_call.1} parent=71 // pred_check
          %p572 = pneg %p207
        $region78: #{tpu_custom_call.1} parent=71 // pred_check_branch
          %574 = sbr.rel (%p572) target = $region80
        $region79: #{tpu_custom_call.1} parent=71 // pred_region
          %s575 = sand.u32 %s192, 1
          %s576 = scalar_lea.sflag [#allocation13], %s575
          %s577 = sand.u32 %s192, 1
          %s578 = smul.addr %s577, 8
          %s579 = scalar_lea.vmem [#allocation12], %s578
          %580 = dma.done %s576, 128
        $region80: #{tpu_custom_call.1} parent=71 // pred_fallthru
          _
      $region72: #{tpu_custom_call.1} parent=5 // pred_fallthru
        _
    $region6: #{tpu_custom_call.1} parent=1 // loop_footer
      %s28 = sadd.s32 1, %s24
    $region7: #{tpu_custom_call.1} parent=1 // loop_footer_branch
      %23 = sbr.rel target = $region3
    $region8: #{tpu_custom_call.1} parent=1 // loop_exit
      _
    %581 = vsyncpa [#allocation3], 1
    %s582 = scalar_lea.sflag [#allocation3], 1
    %583 = vsyncpa %s582, 1
    %584 = vsyncpa [#allocation6], 1
    %585 = vsyncpa [#allocation9], 1
    %586 = vsyncpa [#allocation4], 1
    %s587 = scalar_lea.sflag [#allocation4], 1
    %588 = vsyncpa %s587, 1
    %589 = vsyncpa [#allocation13], 1
    %s590 = scalar_lea.sflag [#allocation13], 1
    %591 = vsyncpa %s590, 1

</llo_original>
